<compile_context>
chip_gen: v7x
topology: tpu7x:2x2x1
jax: 0.10.0
libtpu: 0.0.40
codegen_flags: <defaults>
</compile_context>

<pallas_src>
import functools

import jax
import jax.numpy as jnp
from jax.experimental import pallas as pl
from jax.experimental.pallas import tpu as pltpu

LANES = 128
SUBLANES = 8
TARGET_BLOCK_BYTES = 2 * 1024 * 1024      # per-input block target (~2 MiB)
VMEM_LIMIT_BYTES = 32 * 1024 * 1024       # safe on v5e/v6e (128 MiB phys) and v7x (64 MiB)
_MIN_KERNEL_ELEMS = SUBLANES * LANES      # below one (8,128) vreg, plain jnp is cheaper


def _int_power(x, gamma):
    """(x)**gamma with integer gamma lowered as VPU multiplies (no pow -> exp/log)."""
    if gamma == 4:
        sq = x * x
        return sq * sq
    if isinstance(gamma, int) and gamma >= 0:
        if gamma == 0:
            return jnp.ones_like(x)
        acc = None
        base, g = x, gamma
        while g:
            if g & 1:
                acc = base if acc is None else acc * base
            g >>= 1
            if g:
                base = base * base
        return acc
    return x ** gamma


def _focal_tile(p_ref, t_ref, *, scale, gamma, hard_targets):
    """Per-tile focal-loss terms, already scaled by alpha/n, in f32."""
    p = p_ref[...].astype(jnp.float32)
    t = t_ref[...].astype(jnp.float32)
    if hard_targets:
        # Exact for 0/1 targets: one log, no exp (3 EUP pushes -> 1).
        pt = jnp.where(t > 0.5, p, 1.0 - p)
        bce = -jnp.maximum(jnp.log(pt), -100.0)
    else:
        # General soft-target path == torch F.binary_cross_entropy: clamp each log
        # term at -100 BEFORE weighting, factored to save one VPU multiply.
        log_p = jnp.maximum(jnp.log(p), -100.0)
        log_1mp = jnp.maximum(jnp.log(1.0 - p), -100.0)
        bce = -(log_1mp + t * (log_p - log_1mp))
        pt = jnp.exp(-bce)
    w = _int_power(1.0 - pt, gamma)
    return (scale * w) * bce


def _focal_loss_kernel(p_ref, t_ref, out_ref, *, scale, gamma, hard_targets,
                       tile_rows, inner, total_tiles, rows,
                       has_partial, has_overhang):
    c = pl.program_id(0)          # chunk (one per TensorCore on multi-core parts)
    i = pl.program_id(1)          # reduction step within the chunk
    tile_idx = c * inner + i

    @pl.when(i == 0)
    def _init():
        out_ref[...] = jnp.zeros_like(out_ref)

    def accumulate(mask_rows):
        focal = _focal_tile(p_ref, t_ref, scale=scale, gamma=gamma,
                            hard_targets=hard_targets)
        if mask_rows:
            # Only executed on the single partial last tile: zero rows past the slab end
            # (their block contents are unspecified). Select kills any NaN/inf there.
            valid_rows = rows - (total_tiles - 1) * tile_rows   # static, 0 < v <= tile_rows
            row = jax.lax.broadcasted_iota(jnp.int32, focal.shape, 0)
            focal = jnp.where(row < valid_rows, focal, 0.0)
        # Fold the (tile_rows, 128) tile into the resident (8, 128) accumulator block
        # (a straight stack of VPU adds; tile_rows is always a multiple of 8).
        if tile_rows == SUBLANES:
            out_ref[...] += focal
        else:
            out_ref[...] += focal.reshape(tile_rows // SUBLANES, SUBLANES, LANES).sum(axis=0)

    if not (has_partial or has_overhang):
        accumulate(mask_rows=False)
    else:
        num_full = total_tiles - (1 if has_partial else 0)
        if num_full > 0:
            @pl.when(tile_idx < num_full)
            def _full_tiles():
                accumulate(mask_rows=False)
        if has_partial:
            @pl.when(tile_idx == total_tiles - 1)
            def _partial_tile():
                accumulate(mask_rows=True)
        # tile_idx >= total_tiles (overhang steps of an uneven chunk split) fall through
        # both branches: the duplicated tile is never accumulated.


def _detect_num_tensorcores():
    """Best-effort TensorCores-per-chip (1 on v5e/v6e, 2 on v7x/megacore)."""
    try:
        info = pltpu.get_tpu_info()
    except Exception:
        return 1
    for name in ("num_cores", "core_count", "num_tensorcores",
                 "tensorcores_per_chip", "tensor_cores_per_chip"):
        val = getattr(info, name, None)
        if val is None:
            continue
        try:
            val = int(val)
        except (TypeError, ValueError):
            continue
        if 1 <= val <= 8:
            return val
    return 1


def _focal_partials(p2d, t2d, scale, gamma, hard_targets):
    """Run the Pallas kernel over a [rows, 128] slab; returns (num_chunks*8, 128) partials."""
    rows = p2d.shape[0]
    itemsize = max(jnp.dtype(p2d.dtype).itemsize, jnp.dtype(t2d.dtype).itemsize)
    max_tile_rows = max(SUBLANES,
                        (TARGET_BLOCK_BYTES // (LANES * itemsize)) // SUBLANES * SUBLANES)
    tile_rows = min(max_tile_rows, (rows // SUBLANES) * SUBLANES)   # multiple of 8, <= rows
    total_tiles = pl.cdiv(rows, tile_rows)
    has_partial = (rows % tile_rows) != 0

    cores = _detect_num_tensorcores()
    num_chunks = cores if (cores > 1 and total_tiles >= cores) else 1
    inner = pl.cdiv(total_tiles, num_chunks)
    has_overhang = (num_chunks * inner) != total_tiles

    last_block = total_tiles - 1
    if has_overhang:
        def in_map(c, i):
            # Clamp overhanging steps onto a valid block; they are skipped in-kernel.
            return (jnp.minimum(c * inner + i, last_block), 0)
    else:
        def in_map(c, i):
            return (c * inner + i, 0)

    lead_sem = (getattr(pltpu, "CORE_PARALLEL", pltpu.PARALLEL)
                if num_chunks > 1 else pltpu.ARBITRARY)

    kernel = functools.partial(
        _focal_loss_kernel,
        scale=scale, gamma=gamma, hard_targets=bool(hard_targets),
        tile_rows=tile_rows, inner=inner, total_tiles=total_tiles, rows=rows,
        has_partial=bool(has_partial), has_overhang=bool(has_overhang))

    return pl.pallas_call(
        kernel,
        out_shape=jax.ShapeDtypeStruct((num_chunks * SUBLANES, LANES), jnp.float32),
        grid_spec=pltpu.PrefetchScalarGridSpec(
            num_scalar_prefetch=0,
            grid=(num_chunks, inner),
            in_specs=[pl.BlockSpec((tile_rows, LANES), in_map),
                      pl.BlockSpec((tile_rows, LANES), in_map)],
            # Same out block for every i -> resident per-chunk accumulator.
            out_specs=pl.BlockSpec((SUBLANES, LANES), lambda c, i: (c, 0)),
        ),
        compiler_params=pltpu.CompilerParams(
            dimension_semantics=(lead_sem, pltpu.ARBITRARY),
            vmem_limit_bytes=VMEM_LIMIT_BYTES,
        ),
    )(p2d, t2d)


def _focal_sum_jnp(p, t, alpha, gamma):
    """Plain-jnp SUM of focal terms (used for the tiny tail and as the test reference)."""
    p = p.astype(jnp.float32)
    t = t.astype(jnp.float32)
    log_p = jnp.maximum(jnp.log(p), -100.0)
    log_1mp = jnp.maximum(jnp.log(1.0 - p), -100.0)
    bce = -(t * log_p + (1.0 - t) * log_1mp)
    pt = jnp.exp(-bce)
    return jnp.sum(alpha * (1.0 - pt) ** gamma * bce)


def binary_focal_loss(inputs, targets, alpha=0.5, gamma=4, hard_targets=False):
    """Mean binary focal loss over probabilities == PyTorch BinaryFocalLoss with its
    defaults (alpha=0.5, gamma=4, logits=False, reduce=True).

    hard_targets=True enables a 1-log fast path exact only for 0/1 targets.
    Inputs may be f32 or bf16 (wire dtype is kept; the kernel upcasts to f32)."""
    assert inputs.shape == targets.shape
    n = int(inputs.size)
    if n == 0:
        return jnp.float32(0.0)
    scale = float(alpha) / float(n)          # folded into the per-element kernel scale

    p_flat = inputs.reshape(-1)              # zero-copy for contiguous layouts
    t_flat = targets.reshape(-1)

    rem = n % LANES
    n_main = n - rem
    if n_main < _MIN_KERNEL_ELEMS:           # tiny input: not worth a kernel launch
        n_main, rem = 0, n

    total = jnp.zeros((), jnp.float32)
    if n_main:
        if rem:
            # Rare (n % 128 != 0): this prefix slice may materialize one copy of the
            # main slab; the common aligned case below is a pure zero-copy reshape.
            p2d = p_flat[:n_main].reshape(n_main // LANES, LANES)
            t2d = t_flat[:n_main].reshape(n_main // LANES, LANES)
        else:
            p2d = p_flat.reshape(n_main // LANES, LANES)
            t2d = t_flat.reshape(n_main // LANES, LANES)
        partials = _focal_partials(p2d, t2d, scale, gamma, hard_targets)
        total = total + jnp.sum(partials)
    if rem:
        total = total + scale * _focal_sum_jnp(p_flat[n_main:], t_flat[n_main:], 1.0, gamma)
    return total


def binary_focal_loss_ref(inputs, targets, alpha=0.5, gamma=4):
    n = inputs.size
    return _focal_sum_jnp(inputs.reshape(-1), targets.reshape(-1), alpha, gamma) / n


if __name__ == "__main__":
    key = jax.random.PRNGKey(0)
    k1, k2 = jax.random.split(key)

    # Segmentation-style probability maps + hard 0/1 masks (NCHW).
    shape = (2, 4, 16, 16)
    inputs = jax.random.uniform(k1, shape, jnp.float32, minval=0.01, maxval=0.99)
    targets = (jax.random.uniform(k2, shape, jnp.float32) > 0.5).astype(jnp.float32)

    ref = binary_focal_loss_ref(inputs, targets)

    # General path (exact module semantics, supports soft targets).
    out = jax.block_until_ready(binary_focal_loss(inputs, targets))
    assert jnp.allclose(out, ref, rtol=1e-4, atol=1e-6), (out, ref)

    # 1-log fast path, valid here because targets are hard 0/1.
    out_fast = jax.block_until_ready(binary_focal_loss(inputs, targets, hard_targets=True))
    assert jnp.allclose(out_fast, ref, rtol=1e-4, atol=1e-6), (out_fast, ref)

    # Exercise the partial-last-tile path (rows not a multiple of the tile height),
    # with soft (non-binary) targets.
    shape2 = (2, 3, 16, 16)
    k3, k4 = jax.random.split(k2)
    inputs2 = jax.random.uniform(k3, shape2, jnp.float32, minval=0.01, maxval=0.99)
    targets2 = jax.random.uniform(k4, shape2, jnp.float32)
    ref2 = binary_focal_loss_ref(inputs2, targets2)
    out2 = jax.block_until_ready(binary_focal_loss(inputs2, targets2))
    assert jnp.allclose(out2, ref2, rtol=1e-4, atol=1e-6), (out2, ref2)

    print("KERNEL_OK")
</pallas_src>

<mosaic_0001>
module attributes {stable_mosaic.version = 11 : i64} {
  func.func @_focal_loss_kernel(%arg0: i32, %arg1: i32, %arg2: memref<16x128xf32, #tpu.memory_space<vmem>>, %arg3: memref<16x128xf32, #tpu.memory_space<vmem>>, %arg4: memref<8x128xf32, #tpu.memory_space<vmem>>) attributes {dimension_semantics = [#tpu.dimension_semantics<arbitrary>, #tpu.dimension_semantics<arbitrary>], iteration_bounds = array<i64: 1, 1>, scalar_prefetch = 0 : i64, scratch_operands = 0 : i64, tpu.core_type = #tpu.core_type<tc>, window_params = [{transform_indices = @transform_0, window_bounds = array<i64: 16, 128>}, {transform_indices = @transform_1, window_bounds = array<i64: 16, 128>}, {transform_indices = @transform_2, window_bounds = array<i64: 8, 128>}]} {
    %c0_i32 = arith.constant 0 : i32
    %0 = arith.cmpi eq, %arg1, %c0_i32 : i32
    %1 = arith.extui %0 : i1 to i32
    %c0_i32_0 = arith.constant 0 : i32
    %2 = arith.cmpi ne, %1, %c0_i32_0 : i32
    scf.if %2 {
      %cst_15 = arith.constant 0.000000e+00 : f32
      %33 = vector.broadcast %cst_15 : f32 to vector<8x128xf32>
      %c0_16 = arith.constant 0 : index
      %c0_17 = arith.constant 0 : index
      %34 = vector.load %arg4[%c0_16, %c0_17] : memref<8x128xf32, #tpu.memory_space<vmem>>, vector<8x128xf32>
      tpu.vector_store %arg4[%c0_16, %c0_17], %33 {strides = array<i32>} : memref<8x128xf32, #tpu.memory_space<vmem>>, vector<8x128xf32>,
    } else {
    }
    %c0 = arith.constant 0 : index
    %c0_1 = arith.constant 0 : index
    %3 = vector.load %arg2[%c0, %c0_1] : memref<16x128xf32, #tpu.memory_space<vmem>>, vector<16x128xf32>
    %c0_2 = arith.constant 0 : index
    %c0_3 = arith.constant 0 : index
    %4 = vector.load %arg3[%c0_2, %c0_3] : memref<16x128xf32, #tpu.memory_space<vmem>>, vector<16x128xf32>
    %5 = math.log %3 : vector<16x128xf32>
    %cst = arith.constant -1.000000e+02 : f32
    %6 = vector.broadcast %cst : f32 to vector<16x128xf32>
    %7 = arith.maximumf %5, %6 : vector<16x128xf32>
    %cst_4 = arith.constant 1.000000e+00 : f32
    %8 = vector.broadcast %cst_4 : f32 to vector<16x128xf32>
    %9 = arith.subf %8, %3 : vector<16x128xf32>
    %10 = math.log %9 : vector<16x128xf32>
    %cst_5 = arith.constant -1.000000e+02 : f32
    %11 = vector.broadcast %cst_5 : f32 to vector<16x128xf32>
    %12 = arith.maximumf %10, %11 : vector<16x128xf32>
    %13 = arith.subf %7, %12 : vector<16x128xf32>
    %14 = arith.mulf %4, %13 : vector<16x128xf32>
    %15 = arith.addf %12, %14 : vector<16x128xf32>
    %cst_6 = arith.constant 0.000000e+00 : f32
    %16 = vector.broadcast %cst_6 : f32 to vector<16x128xf32>
    %17 = arith.subf %16, %15 : vector<16x128xf32>
    %cst_7 = arith.constant 0.000000e+00 : f32
    %18 = vector.broadcast %cst_7 : f32 to vector<16x128xf32>
    %19 = arith.subf %18, %17 : vector<16x128xf32>
    %20 = math.exp %19 : vector<16x128xf32>
    %cst_8 = arith.constant 1.000000e+00 : f32
    %21 = vector.broadcast %cst_8 : f32 to vector<16x128xf32>
    %22 = arith.subf %21, %20 : vector<16x128xf32>
    %23 = arith.mulf %22, %22 : vector<16x128xf32>
    %24 = arith.mulf %23, %23 : vector<16x128xf32>
    %cst_9 = arith.constant 2.44140625E-4 : f32
    %25 = vector.broadcast %cst_9 : f32 to vector<16x128xf32>
    %26 = arith.mulf %25, %24 : vector<16x128xf32>
    %27 = arith.mulf %26, %17 : vector<16x128xf32>
    %c0_10 = arith.constant 0 : index
    %c0_11 = arith.constant 0 : index
    %28 = vector.load %arg4[%c0_10, %c0_11] : memref<8x128xf32, #tpu.memory_space<vmem>>, vector<8x128xf32>
    %29 = vector.shape_cast %27 : vector<16x128xf32> to vector<2x8x128xf32>
    %cst_12 = arith.constant dense<0.000000e+00> : vector<8x128xf32>
    %30 = vector.multi_reduction <add>, %29, %cst_12 [0] : vector<2x8x128xf32> to vector<8x128xf32>
    %31 = arith.addf %28, %30 : vector<8x128xf32>
    %c0_13 = arith.constant 0 : index
    %c0_14 = arith.constant 0 : index
    %32 = vector.load %arg4[%c0_13, %c0_14] : memref<8x128xf32, #tpu.memory_space<vmem>>, vector<8x128xf32>
    tpu.vector_store %arg4[%c0_13, %c0_14], %31 {strides = array<i32>} : memref<8x128xf32, #tpu.memory_space<vmem>>, vector<8x128xf32>,
    return
  }
  func.func @transform_0(%arg0: i32, %arg1: i32) -> (i32, i32) {
    %c1_i32 = arith.constant 1 : i32
    %0 = arith.muli %arg0, %c1_i32 : i32
    %1 = arith.addi %0, %arg1 : i32
    %c0_i32 = arith.constant 0 : i32
    %c0_i32_0 = arith.constant 0 : i32
    return %1, %c0_i32 : i32, i32
  }
  func.func @transform_1(%arg0: i32, %arg1: i32) -> (i32, i32) {
    %c1_i32 = arith.constant 1 : i32
    %0 = arith.muli %arg0, %c1_i32 : i32
    %1 = arith.addi %0, %arg1 : i32
    %c0_i32 = arith.constant 0 : i32
    %c0_i32_0 = arith.constant 0 : i32
    return %1, %c0_i32 : i32, i32
  }
  func.func @transform_2(%arg0: i32, %arg1: i32) -> (i32, i32) {
    %c0_i32 = arith.constant 0 : i32
    %c0_i32_0 = arith.constant 0 : i32
    return %arg0, %c0_i32 : i32, i32
  }
}

</mosaic_0001>

<llo_original>
// kernel: tpu_custom_call.1
$region0: #{tpu_custom_call.1}
  #allocation0 [shape = 'u32[]', space=smem, size = 0x4, offset = 0x4, fixed_abs, tag = 'smem constant byte address 0x4 - core index']
  #allocation1 [shape = 'u32[144,128]{1,0:T(1,128)}', space=vmem, size = 0x12000, scoped, tag = 'internal scratch']
  %s0 = inlined_call_operand.hbm [shape: f32[16,128], index: 0, kind: input, shape index: {}]
  %s1 = inlined_call_operand.hbm [shape: f32[16,128], index: 1, kind: input, shape index: {}]
  %s2 = inlined_call_operand.hbm [shape: f32[8,128], index: 2, kind: output, shape index: {}]
  %s3 = sld [smem:[#allocation0]]
  $region30: #{tpu_custom_call.1} parent=0
    _
  %s5 = ssub.s32 1, %s3
  %s6 = scalar_select 0, %s5, %s3
  $region1: #{tpu_custom_call.1} parent=0
    #allocation2 [shape = 'u8[8192]{0}', space=vmem, size = 0x2000, scoped, tag = 'input window, operand 0, single buffered']
    #allocation3 [shape = 's32[1]{0}', space=sflag, size = 0x4, scoped, tag = 'scoped memory for tpu_custom_call.1']
    #allocation4 [shape = 's32[1]{0}', space=sflag, size = 0x4, scoped, tag = 'scoped memory for tpu_custom_call.1']
    #allocation5 [shape = 'u8[8192]{0}', space=vmem, size = 0x2000, scoped, tag = 'input window, operand 1, single buffered']
    #allocation6 [shape = 's32[1]{0}', space=sflag, size = 0x4, scoped, tag = 'scoped memory for tpu_custom_call.1']
    #allocation7 [shape = 'u8[4096]{0}', space=vmem, size = 0x1000, scoped, tag = 'output window, operand 0, single buffered']
    %7 = vsyncpa [#allocation3], 0
    %8 = vsyncpa [#allocation6], 0
    %9 = vsyncpa [#allocation4], 0
    // Predicated region
    $region2: #{tpu_custom_call.1} parent=1 // pred_check
      _
    $region3: #{tpu_custom_call.1} parent=1 // pred_check_branch
      %11 = sbr.rel (0) target = $region5
    $region4: #{tpu_custom_call.1} parent=1 // pred_region
      %s12 = sadd.s32 0, 0
      %s13 = smul.u32 2, %s12
      %s15 = ssub.s32 256, 256
      %16 = vsyncadd [#allocation3], %s15
      %s17 = smul.addr %s13, 128
      %s18 = scalar_lea.hbm %s0, %s17
      %s19 = sshll.u32 [#allocation2], 4
      %s20 = int_to_ptr.vmem [resolvable:$true] %s19
      %25 = dma.hbm_to_vmem [thread:$0]  %s18, 256, %s20, [#allocation3], 128, 128, 8
    $region5: #{tpu_custom_call.1} parent=1 // pred_fallthru
      _
    // Predicated region
    $region6: #{tpu_custom_call.1} parent=1 // pred_check
      _
    $region7: #{tpu_custom_call.1} parent=1 // pred_check_branch
      %27 = sbr.rel (0) target = $region9
    $region8: #{tpu_custom_call.1} parent=1 // pred_region
      %s28 = sadd.s32 0, 0
      %s29 = smul.u32 2, %s28
      %s31 = ssub.s32 256, 256
      %32 = vsyncadd [#allocation6], %s31
      %s33 = smul.addr %s29, 128
      %s34 = scalar_lea.hbm %s1, %s33
      %s35 = sshll.u32 [#allocation5], 4
      %s36 = int_to_ptr.vmem [resolvable:$true] %s35
      %41 = dma.hbm_to_vmem [thread:$0]  %s34, 256, %s36, [#allocation6], 128, 128, 8
    $region9: #{tpu_custom_call.1} parent=1 // pred_fallthru
      _
    // Predicated region
    $region10: #{tpu_custom_call.1} parent=1 // pred_check
      _
    $region11: #{tpu_custom_call.1} parent=1 // pred_check_branch
      %43 = sbr.rel (0) target = $region13
    $region12: #{tpu_custom_call.1} parent=1 // pred_region
      %44 = dma.done [#allocation3], 256
    $region13: #{tpu_custom_call.1} parent=1 // pred_fallthru
      _
    // Predicated region
    $region14: #{tpu_custom_call.1} parent=1 // pred_check
      _
    $region15: #{tpu_custom_call.1} parent=1 // pred_check_branch
      %46 = sbr.rel (0) target = $region17
    $region16: #{tpu_custom_call.1} parent=1 // pred_region
      %47 = dma.done [#allocation6], 256
    $region17: #{tpu_custom_call.1} parent=1 // pred_fallthru
      _
    %s48 = sadd.s32 0, 0
    %s49 = smul.u32 2, %s48
    %s50 = sadd.s32 0, 0
    %s51 = smul.u32 2, %s50
    %p52 = scmp.eq.s32.totalorder 0, 0
    // Predicated region
    $region18: #{tpu_custom_call.1} parent=1 // pred_check
      %p53 = pneg %p52
    $region19: #{tpu_custom_call.1} parent=1 // pred_check_branch
      %55 = sbr.rel (%p53) target = $region21
    $region20: #{tpu_custom_call.1} parent=1 // pred_region
      %56 = vst [vmem:[#allocation7] sm:$0xff] 0.0
    $region21: #{tpu_custom_call.1} parent=1 // pred_fallthru
      _
    %v57 = vld [vmem:[#allocation2] sm:$0xff]
    %v58 = vld [vmem:[#allocation2 + $0x8] sm:$0xff]
    %v59 = vld [vmem:[#allocation5] sm:$0xff]
    %v60 = vld [vmem:[#allocation5 + $0x8] sm:$0xff]
    %v61 = vlog2.pop %v57
    %v62 = vmul.f32 %v61, 0.6931472
    %v63 = vlog2.pop %v58
    %v64 = vmul.f32 %v63, 0.6931472
    %v65 = vmax.f32 %v62, -100.0
    %v66 = vmax.f32 %v64, -100.0
    %v67 = vsub.f32 1.0, %v57
    %v68 = vsub.f32 1.0, %v58
    %v69 = vlog2.pop %v67
    %v70 = vmul.f32 %v69, 0.6931472
    %v71 = vlog2.pop %v68
    %v72 = vmul.f32 %v71, 0.6931472
    %v73 = vmax.f32 %v70, -100.0
    %v74 = vmax.f32 %v72, -100.0
    %v75 = vsub.f32 %v65, %v73
    %v76 = vsub.f32 %v66, %v74
    %v77 = vmul.f32 %v59, %v75
    %v78 = vmul.f32 %v60, %v76
    %v79 = vadd.f32 %v73, %v77
    %v80 = vadd.f32 %v74, %v78
    %v81 = vsub.f32 0.0, %v79
    %v82 = vsub.f32 0.0, %v80
    %v83 = vsub.f32 0.0, %v81
    %v84 = vsub.f32 0.0, %v82
    %v85 = vmul.f32 %v83, 1.442695
    %v86 = vpow.pop %v85
    %v87 = vmul.f32 %v84, 1.442695
    %v88 = vpow.pop %v87
    %v89 = vsub.f32 1.0, %v86
    %v90 = vsub.f32 1.0, %v88
    %v91 = vmul.f32 %v89, %v89
    %v92 = vmul.f32 %v90, %v90
    %v93 = vmul.f32 %v91, %v91
    %v94 = vmul.f32 %v92, %v92
    %v95 = vmul.f32 %v93, 0.00024414063
    %v96 = vmul.f32 %v94, 0.00024414063
    %v97 = vmul.f32 %v95, %v81
    %v98 = vmul.f32 %v96, %v82
    %v99 = vld [vmem:[#allocation7] sm:$0xff]
    %v100 = vadd.f32 %v97, %v98
    %v101 = vadd.f32 %v99, %v100
    %102 = vst [vmem:[#allocation7] sm:$0xff] %v101
    // Predicated region
    $region22: #{tpu_custom_call.1} parent=1 // pred_check
      _
    $region23: #{tpu_custom_call.1} parent=1 // pred_check_branch
      %104 = sbr.rel (0) target = $region25
    $region24: #{tpu_custom_call.1} parent=1 // pred_region
      %s106 = ssub.s32 128, 128
      %107 = vsyncadd [#allocation4], %s106
      %s109 = sshll.u32 [#allocation7], 4
      %s110 = int_to_ptr.vmem [resolvable:$true] %s109
      %112 = dma.vmem_to_hbm [thread:$0]  %s110, 128, %s2, [#allocation4]
    $region25: #{tpu_custom_call.1} parent=1 // pred_fallthru
      _
    // Predicated region
    $region26: #{tpu_custom_call.1} parent=1 // pred_check
      _
    $region27: #{tpu_custom_call.1} parent=1 // pred_check_branch
      %114 = sbr.rel (0) target = $region29
    $region28: #{tpu_custom_call.1} parent=1 // pred_region
      %115 = dma.done [#allocation4], 128
    $region29: #{tpu_custom_call.1} parent=1 // pred_fallthru
      _
    %116 = vsyncpa [#allocation3], 1
    %117 = vsyncpa [#allocation6], 1
    %118 = vsyncpa [#allocation4], 1

</llo_original>
